<compile_context>
chip_gen: v5e
topology: v5e:2x2
jax: 0.10.0
libtpu: 0.0.40
codegen_flags: <defaults>
</compile_context>

<pallas_src>
import jax
import jax.numpy as jnp
from jax.experimental import pallas as pl
from jax.experimental.pallas import tpu as pltpu

EPS = 1e-3

# Per-grid-step VMEM budget: stays well under v7x's 64 MiB physical VMEM
# (v5e/v6e have 128 MiB), leaving headroom for compiler-internal scratch.
_VMEM_BUDGET_BYTES = 40 << 20
_VMEM_LIMIT_BYTES = 48 << 20


def _dwconv_bn_kernel(x_ref, w_ref, gamma_ref, beta_ref, o_ref, xp_ref):
    # x_ref:     (N, H, W, Cb)   input block (channels on lanes)
    # w_ref:     (3, 3, Cb)      depthwise taps for this channel block
    # gamma_ref: (1, Cb)         BN scale
    # beta_ref:  (1, Cb)         BN shift
    # o_ref:     (N, H, W, Cb)   output block
    # xp_ref:    VMEM scratch (N, H+2, W+2, Cb) f32 -- zero-padded input
    N, H, W, Cb = o_ref.shape

    # Fused zero padding: only the 1-pixel halo is zero-filled (4 thin
    # stores); the interior is overwritten immediately by the input tile.
    zrow = jnp.zeros((N, 1, W + 2, Cb), jnp.float32)
    xp_ref[:, 0:1, :, :] = zrow
    xp_ref[:, H + 1:H + 2, :, :] = zrow
    zcol = jnp.zeros((N, H, 1, Cb), jnp.float32)
    xp_ref[:, 1:H + 1, 0:1, :] = zcol
    xp_ref[:, 1:H + 1, W + 1:W + 2, :] = zcol
    xp_ref[:, 1:H + 1, 1:W + 1, :] = x_ref[...].astype(jnp.float32)

    # Small weight tile loaded once; per-tap rows broadcast along lanes.
    w = w_ref[...].astype(jnp.float32)

    # Depthwise 3x3 conv: 9 shifted multiply-accumulates on the VPU (MXU is
    # correctly unused for depthwise).  Each tap window is a static ref-side
    # slice: loaded, consumed into `acc`, dead before the next one.
    acc = jnp.zeros((N, H, W, Cb), jnp.float32)
    for dh in range(3):
        for dw in range(3):
            tap = xp_ref[:, dh:dh + H, dw:dw + W, :]
            acc = acc + tap * w[dh, dw, :]

    # BatchNorm2d training-mode batch stats over (N, H, W), biased variance,
    # computed from sum and sum-of-squares (no `centered` temporary).
    # Per-channel stats => channel blocks are fully independent.
    inv_count = 1.0 / float(N * H * W)
    s = jnp.sum(acc, axis=(0, 1, 2), keepdims=True)
    ss = jnp.sum(acc * acc, axis=(0, 1, 2), keepdims=True)
    mean = s * inv_count
    var = ss * inv_count - mean * mean
    scale = jax.lax.rsqrt(var + EPS) * gamma_ref[0, :]
    shift = beta_ref[0, :] - mean * scale
    o_ref[...] = (acc * scale + shift).astype(o_ref.dtype)


def _pick_channel_block(C, N, H, W, itemsize=4):
    """Largest lane-aligned channel tile that fits VMEM, preferring an even
    grid length >= 2 (balanced v7x megacore split, DMA overlap on v5e/v6e)."""

    def fits(cb):
        blk = N * H * W * cb
        pad = N * (H + 2) * (W + 2) * cb
        # 2x double-buffered input + 2x double-buffered output (io dtype)
        # + padded f32 scratch + ~2 live full-size f32 temporaries.
        need = 2 * blk * itemsize + 2 * blk * itemsize + pad * 4 + 2 * blk * 4
        return need <= _VMEM_BUDGET_BYTES

    # Candidates: divisors of C that are multiples of 128 (full vreg lanes),
    # largest first.  Fallback: the whole channel dim.
    cands = [cb for cb in range(128 * (C // 128), 0, -128) if C % cb == 0]
    if not cands:
        cands = [C]

    for want_even in (True, False):
        for cb in cands:
            steps = C // cb
            if steps >= 2 and (steps % 2 == 0 or not want_even) and fits(cb):
                return cb
    for cb in cands:
        if fits(cb):
            return cb
    return cands[-1]


def dwconv_bn_nhwc(x_nhwc, w_hwc, gamma, beta):
    """Fused depthwise conv + BN, NHWC in / NHWC out (preferred layout)."""
    N, H, W, C = x_nhwc.shape
    Cb = _pick_channel_block(C, N, H, W, jnp.dtype(x_nhwc.dtype).itemsize)
    gamma2 = gamma.reshape(1, C)
    beta2 = beta.reshape(1, C)

    return pl.pallas_call(
        _dwconv_bn_kernel,
        out_shape=jax.ShapeDtypeStruct((N, H, W, C), x_nhwc.dtype),
        grid_spec=pltpu.PrefetchScalarGridSpec(
            num_scalar_prefetch=0,
            grid=(C // Cb,),
            in_specs=[
                pl.BlockSpec((N, H, W, Cb), lambda c: (0, 0, 0, c)),
                pl.BlockSpec((3, 3, Cb), lambda c: (0, 0, c)),
                pl.BlockSpec((1, Cb), lambda c: (0, c)),
                pl.BlockSpec((1, Cb), lambda c: (0, c)),
            ],
            out_specs=pl.BlockSpec((N, H, W, Cb), lambda c: (0, 0, 0, c)),
            scratch_shapes=[pltpu.VMEM((N, H + 2, W + 2, Cb), jnp.float32)],
        ),
        compiler_params=pltpu.CompilerParams(
            dimension_semantics=("parallel",),
            vmem_limit_bytes=_VMEM_LIMIT_BYTES,
        ),
    )(x_nhwc, w_hwc, gamma2, beta2)


def dwconv_bn(x_nchw, w_oihw, gamma, beta):
    """NCHW-compatible wrapper matching the PyTorch module convention.

    x_nchw: (N, C, H, W); w_oihw: (C, 1, 3, 3); gamma/beta: (C,).
    TODO(synk): keep the surrounding model NHWC to drop these transposes
    (they roughly triple HBM traffic for this HBM-bound op).
    """
    x_nhwc = jnp.transpose(x_nchw, (0, 2, 3, 1))
    w_hwc = jnp.transpose(w_oihw[:, 0, :, :], (1, 2, 0))  # (3, 3, C)
    out_nhwc = dwconv_bn_nhwc(x_nhwc, w_hwc, gamma, beta)
    return jnp.transpose(out_nhwc, (0, 3, 1, 2))


def reference(x_nchw, w_oihw, gamma, beta):
    """Pure-JAX reference (depthwise conv + training-mode batchnorm)."""
    C = x_nchw.shape[1]
    y = jax.lax.conv_general_dilated(
        x_nchw, w_oihw,
        window_strides=(1, 1),
        padding=((1, 1), (1, 1)),
        feature_group_count=C,
        dimension_numbers=("NCHW", "OIHW", "NCHW"),
    )
    mean = jnp.mean(y, axis=(0, 2, 3), keepdims=True)
    var = jnp.mean((y - mean) ** 2, axis=(0, 2, 3), keepdims=True)
    return (y - mean) * jax.lax.rsqrt(var + EPS) * gamma[None, :, None, None] \
        + beta[None, :, None, None]


def _run_case(key, N, C, H, W):
    kx, kw, kg, kb = jax.random.split(key, 4)
    x = jax.random.normal(kx, (N, C, H, W), dtype=jnp.float32)
    w = jax.random.normal(kw, (C, 1, 3, 3), dtype=jnp.float32) * 0.1
    gamma = 1.0 + 0.1 * jax.random.normal(kg, (C,), dtype=jnp.float32)
    beta = 0.1 * jax.random.normal(kb, (C,), dtype=jnp.float32)

    out = jax.block_until_ready(dwconv_bn(x, w, gamma, beta))
    ref = jax.block_until_ready(reference(x, w, gamma, beta))

    assert out.shape == (N, C, H, W)
    assert jnp.allclose(out, ref, atol=1e-4, rtol=1e-4), \
        f"mismatch vs reference at shape {(N, C, H, W)}"


if __name__ == "__main__":
    key = jax.random.PRNGKey(0)
    k_small, k_prod = jax.random.split(key, 2)

    # Small shape consistent with the module (grid=2, Cb=128).
    _run_case(k_small, 2, 256, 8, 8)
    # Production module shape (N=1, C=1536, H=W=7; grid=2, Cb=768).
    _run_case(k_prod, 1, 1536, 7, 7)

    print("KERNEL_OK")
</pallas_src>

<mosaic_0001>
module attributes {stable_mosaic.version = 11 : i64} {
  func.func @_dwconv_bn_kernel(%arg0: i32, %arg1: memref<2x8x8x128xf32, #tpu.memory_space<vmem>>, %arg2: memref<3x3x128xf32, #tpu.memory_space<vmem>>, %arg3: memref<1x128xf32, #tpu.memory_space<vmem>>, %arg4: memref<1x128xf32, #tpu.memory_space<vmem>>, %arg5: memref<2x8x8x128xf32, #tpu.memory_space<vmem>>, %arg6: memref<2x10x10x128xf32, #tpu.memory_space<vmem>>) attributes {dimension_semantics = [#tpu.dimension_semantics<parallel>], iteration_bounds = array<i64: 2>, scalar_prefetch = 0 : i64, scratch_operands = 1 : i64, tpu.core_type = #tpu.core_type<tc>, window_params = [{transform_indices = @transform_0, window_bounds = array<i64: 2, 8, 8, 128>}, {transform_indices = @transform_1, window_bounds = array<i64: 3, 3, 128>}, {transform_indices = @transform_2, window_bounds = array<i64: 1, 128>}, {transform_indices = @transform_3, window_bounds = array<i64: 1, 128>}, {transform_indices = @transform_4, window_bounds = array<i64: 2, 8, 8, 128>}]} {
    %cst = arith.constant 0.000000e+00 : f32
    %0 = vector.broadcast %cst : f32 to vector<2x1x10x128xf32>
    %c0 = arith.constant 0 : index
    %c0_0 = arith.constant 0 : index
    %c0_1 = arith.constant 0 : index
    %c0_2 = arith.constant 0 : index
    %1 = vector.load %arg6[%c0, %c0_0, %c0_1, %c0_2] : memref<2x10x10x128xf32, #tpu.memory_space<vmem>>, vector<2x1x10x128xf32>
    tpu.vector_store %arg6[%c0, %c0_0, %c0_1, %c0_2], %0 {strides = array<i32>} : memref<2x10x10x128xf32, #tpu.memory_space<vmem>>, vector<2x1x10x128xf32>,
    %c0_3 = arith.constant 0 : index
    %c9 = arith.constant 9 : index
    %c0_4 = arith.constant 0 : index
    %c0_5 = arith.constant 0 : index
    %2 = vector.load %arg6[%c0_3, %c9, %c0_4, %c0_5] : memref<2x10x10x128xf32, #tpu.memory_space<vmem>>, vector<2x1x10x128xf32>
    tpu.vector_store %arg6[%c0_3, %c9, %c0_4, %c0_5], %0 {strides = array<i32>} : memref<2x10x10x128xf32, #tpu.memory_space<vmem>>, vector<2x1x10x128xf32>,
    %cst_6 = arith.constant 0.000000e+00 : f32
    %3 = vector.broadcast %cst_6 : f32 to vector<2x8x1x128xf32>
    %c0_7 = arith.constant 0 : index
    %c1 = arith.constant 1 : index
    %c0_8 = arith.constant 0 : index
    %c0_9 = arith.constant 0 : index
    %4 = vector.load %arg6[%c0_7, %c1, %c0_8, %c0_9] : memref<2x10x10x128xf32, #tpu.memory_space<vmem>>, vector<2x8x1x128xf32>
    tpu.vector_store %arg6[%c0_7, %c1, %c0_8, %c0_9], %3 {strides = array<i32>} : memref<2x10x10x128xf32, #tpu.memory_space<vmem>>, vector<2x8x1x128xf32>,
    %c0_10 = arith.constant 0 : index
    %c1_11 = arith.constant 1 : index
    %c9_12 = arith.constant 9 : index
    %c0_13 = arith.constant 0 : index
    %5 = vector.load %arg6[%c0_10, %c1_11, %c9_12, %c0_13] : memref<2x10x10x128xf32, #tpu.memory_space<vmem>>, vector<2x8x1x128xf32>
    tpu.vector_store %arg6[%c0_10, %c1_11, %c9_12, %c0_13], %3 {strides = array<i32>} : memref<2x10x10x128xf32, #tpu.memory_space<vmem>>, vector<2x8x1x128xf32>,
    %c0_14 = arith.constant 0 : index
    %c0_15 = arith.constant 0 : index
    %c0_16 = arith.constant 0 : index
    %c0_17 = arith.constant 0 : index
    %6 = vector.load %arg1[%c0_14, %c0_15, %c0_16, %c0_17] : memref<2x8x8x128xf32, #tpu.memory_space<vmem>>, vector<2x8x8x128xf32>
    %c0_18 = arith.constant 0 : index
    %c1_19 = arith.constant 1 : index
    %c1_20 = arith.constant 1 : index
    %c0_21 = arith.constant 0 : index
    %7 = vector.load %arg6[%c0_18, %c1_19, %c1_20, %c0_21] : memref<2x10x10x128xf32, #tpu.memory_space<vmem>>, vector<2x8x8x128xf32>
    tpu.vector_store %arg6[%c0_18, %c1_19, %c1_20, %c0_21], %6 {strides = array<i32>} : memref<2x10x10x128xf32, #tpu.memory_space<vmem>>, vector<2x8x8x128xf32>,
    %c0_22 = arith.constant 0 : index
    %c0_23 = arith.constant 0 : index
    %c0_24 = arith.constant 0 : index
    %8 = vector.load %arg2[%c0_22, %c0_23, %c0_24] : memref<3x3x128xf32, #tpu.memory_space<vmem>>, vector<3x3x128xf32>
    %cst_25 = arith.constant 0.000000e+00 : f32
    %9 = vector.broadcast %cst_25 : f32 to vector<2x8x8x128xf32>
    %c0_26 = arith.constant 0 : index
    %c0_27 = arith.constant 0 : index
    %c0_28 = arith.constant 0 : index
    %c0_29 = arith.constant 0 : index
    %10 = vector.load %arg6[%c0_26, %c0_27, %c0_28, %c0_29] : memref<2x10x10x128xf32, #tpu.memory_space<vmem>>, vector<2x8x8x128xf32>
    %11 = vector.extract_strided_slice %8 {offsets = [0, 0, 0], sizes = [1, 1, 128], strides = [1, 1, 1]} : vector<3x3x128xf32> to vector<1x1x128xf32>
    %12 = vector.shape_cast %11 : vector<1x1x128xf32> to vector<128xf32>
    %13 = vector.shape_cast %12 : vector<128xf32> to vector<1x1x1x128xf32>
    %14 = vector.broadcast %13 : vector<1x1x1x128xf32> to vector<2x8x8x128xf32>
    %15 = arith.mulf %10, %14 : vector<2x8x8x128xf32>
    %16 = arith.addf %9, %15 : vector<2x8x8x128xf32>
    %c0_30 = arith.constant 0 : index
    %c0_31 = arith.constant 0 : index
    %c1_32 = arith.constant 1 : index
    %c0_33 = arith.constant 0 : index
    %17 = vector.load %arg6[%c0_30, %c0_31, %c1_32, %c0_33] : memref<2x10x10x128xf32, #tpu.memory_space<vmem>>, vector<2x8x8x128xf32>
    %18 = vector.extract_strided_slice %8 {offsets = [0, 1, 0], sizes = [1, 1, 128], strides = [1, 1, 1]} : vector<3x3x128xf32> to vector<1x1x128xf32>
    %19 = vector.shape_cast %18 : vector<1x1x128xf32> to vector<128xf32>
    %20 = vector.shape_cast %19 : vector<128xf32> to vector<1x1x1x128xf32>
    %21 = vector.broadcast %20 : vector<1x1x1x128xf32> to vector<2x8x8x128xf32>
    %22 = arith.mulf %17, %21 : vector<2x8x8x128xf32>
    %23 = arith.addf %16, %22 : vector<2x8x8x128xf32>
    %c0_34 = arith.constant 0 : index
    %c0_35 = arith.constant 0 : index
    %c2 = arith.constant 2 : index
    %c0_36 = arith.constant 0 : index
    %24 = vector.load %arg6[%c0_34, %c0_35, %c2, %c0_36] : memref<2x10x10x128xf32, #tpu.memory_space<vmem>>, vector<2x8x8x128xf32>
    %25 = vector.extract_strided_slice %8 {offsets = [0, 2, 0], sizes = [1, 1, 128], strides = [1, 1, 1]} : vector<3x3x128xf32> to vector<1x1x128xf32>
    %26 = vector.shape_cast %25 : vector<1x1x128xf32> to vector<128xf32>
    %27 = vector.shape_cast %26 : vector<128xf32> to vector<1x1x1x128xf32>
    %28 = vector.broadcast %27 : vector<1x1x1x128xf32> to vector<2x8x8x128xf32>
    %29 = arith.mulf %24, %28 : vector<2x8x8x128xf32>
    %30 = arith.addf %23, %29 : vector<2x8x8x128xf32>
    %c0_37 = arith.constant 0 : index
    %c1_38 = arith.constant 1 : index
    %c0_39 = arith.constant 0 : index
    %c0_40 = arith.constant 0 : index
    %31 = vector.load %arg6[%c0_37, %c1_38, %c0_39, %c0_40] : memref<2x10x10x128xf32, #tpu.memory_space<vmem>>, vector<2x8x8x128xf32>
    %32 = vector.extract_strided_slice %8 {offsets = [1, 0, 0], sizes = [1, 1, 128], strides = [1, 1, 1]} : vector<3x3x128xf32> to vector<1x1x128xf32>
    %33 = vector.shape_cast %32 : vector<1x1x128xf32> to vector<128xf32>
    %34 = vector.shape_cast %33 : vector<128xf32> to vector<1x1x1x128xf32>
    %35 = vector.broadcast %34 : vector<1x1x1x128xf32> to vector<2x8x8x128xf32>
    %36 = arith.mulf %31, %35 : vector<2x8x8x128xf32>
    %37 = arith.addf %30, %36 : vector<2x8x8x128xf32>
    %c0_41 = arith.constant 0 : index
    %c1_42 = arith.constant 1 : index
    %c1_43 = arith.constant 1 : index
    %c0_44 = arith.constant 0 : index
    %38 = vector.load %arg6[%c0_41, %c1_42, %c1_43, %c0_44] : memref<2x10x10x128xf32, #tpu.memory_space<vmem>>, vector<2x8x8x128xf32>
    %39 = vector.extract_strided_slice %8 {offsets = [1, 1, 0], sizes = [1, 1, 128], strides = [1, 1, 1]} : vector<3x3x128xf32> to vector<1x1x128xf32>
    %40 = vector.shape_cast %39 : vector<1x1x128xf32> to vector<128xf32>
    %41 = vector.shape_cast %40 : vector<128xf32> to vector<1x1x1x128xf32>
    %42 = vector.broadcast %41 : vector<1x1x1x128xf32> to vector<2x8x8x128xf32>
    %43 = arith.mulf %38, %42 : vector<2x8x8x128xf32>
    %44 = arith.addf %37, %43 : vector<2x8x8x128xf32>
    %c0_45 = arith.constant 0 : index
    %c1_46 = arith.constant 1 : index
    %c2_47 = arith.constant 2 : index
    %c0_48 = arith.constant 0 : index
    %45 = vector.load %arg6[%c0_45, %c1_46, %c2_47, %c0_48] : memref<2x10x10x128xf32, #tpu.memory_space<vmem>>, vector<2x8x8x128xf32>
    %46 = vector.extract_strided_slice %8 {offsets = [1, 2, 0], sizes = [1, 1, 128], strides = [1, 1, 1]} : vector<3x3x128xf32> to vector<1x1x128xf32>
    %47 = vector.shape_cast %46 : vector<1x1x128xf32> to vector<128xf32>
    %48 = vector.shape_cast %47 : vector<128xf32> to vector<1x1x1x128xf32>
    %49 = vector.broadcast %48 : vector<1x1x1x128xf32> to vector<2x8x8x128xf32>
    %50 = arith.mulf %45, %49 : vector<2x8x8x128xf32>
    %51 = arith.addf %44, %50 : vector<2x8x8x128xf32>
    %c0_49 = arith.constant 0 : index
    %c2_50 = arith.constant 2 : index
    %c0_51 = arith.constant 0 : index
    %c0_52 = arith.constant 0 : index
    %52 = vector.load %arg6[%c0_49, %c2_50, %c0_51, %c0_52] : memref<2x10x10x128xf32, #tpu.memory_space<vmem>>, vector<2x8x8x128xf32>
    %53 = vector.extract_strided_slice %8 {offsets = [2, 0, 0], sizes = [1, 1, 128], strides = [1, 1, 1]} : vector<3x3x128xf32> to vector<1x1x128xf32>
    %54 = vector.shape_cast %53 : vector<1x1x128xf32> to vector<128xf32>
    %55 = vector.shape_cast %54 : vector<128xf32> to vector<1x1x1x128xf32>
    %56 = vector.broadcast %55 : vector<1x1x1x128xf32> to vector<2x8x8x128xf32>
    %57 = arith.mulf %52, %56 : vector<2x8x8x128xf32>
    %58 = arith.addf %51, %57 : vector<2x8x8x128xf32>
    %c0_53 = arith.constant 0 : index
    %c2_54 = arith.constant 2 : index
    %c1_55 = arith.constant 1 : index
    %c0_56 = arith.constant 0 : index
    %59 = vector.load %arg6[%c0_53, %c2_54, %c1_55, %c0_56] : memref<2x10x10x128xf32, #tpu.memory_space<vmem>>, vector<2x8x8x128xf32>
    %60 = vector.extract_strided_slice %8 {offsets = [2, 1, 0], sizes = [1, 1, 128], strides = [1, 1, 1]} : vector<3x3x128xf32> to vector<1x1x128xf32>
    %61 = vector.shape_cast %60 : vector<1x1x128xf32> to vector<128xf32>
    %62 = vector.shape_cast %61 : vector<128xf32> to vector<1x1x1x128xf32>
    %63 = vector.broadcast %62 : vector<1x1x1x128xf32> to vector<2x8x8x128xf32>
    %64 = arith.mulf %59, %63 : vector<2x8x8x128xf32>
    %65 = arith.addf %58, %64 : vector<2x8x8x128xf32>
    %c0_57 = arith.constant 0 : index
    %c2_58 = arith.constant 2 : index
    %c2_59 = arith.constant 2 : index
    %c0_60 = arith.constant 0 : index
    %66 = vector.load %arg6[%c0_57, %c2_58, %c2_59, %c0_60] : memref<2x10x10x128xf32, #tpu.memory_space<vmem>>, vector<2x8x8x128xf32>
    %67 = vector.extract_strided_slice %8 {offsets = [2, 2, 0], sizes = [1, 1, 128], strides = [1, 1, 1]} : vector<3x3x128xf32> to vector<1x1x128xf32>
    %68 = vector.shape_cast %67 : vector<1x1x128xf32> to vector<128xf32>
    %69 = vector.shape_cast %68 : vector<128xf32> to vector<1x1x1x128xf32>
    %70 = vector.broadcast %69 : vector<1x1x1x128xf32> to vector<2x8x8x128xf32>
    %71 = arith.mulf %66, %70 : vector<2x8x8x128xf32>
    %72 = arith.addf %65, %71 : vector<2x8x8x128xf32>
    %cst_61 = arith.constant dense<0.000000e+00> : vector<128xf32>
    %73 = vector.multi_reduction <add>, %72, %cst_61 [0, 1, 2] : vector<2x8x8x128xf32> to vector<128xf32>
    %74 = vector.shape_cast %73 : vector<128xf32> to vector<1x1x1x128xf32>
    %75 = arith.mulf %72, %72 : vector<2x8x8x128xf32>
    %cst_62 = arith.constant dense<0.000000e+00> : vector<128xf32>
    %76 = vector.multi_reduction <add>, %75, %cst_62 [0, 1, 2] : vector<2x8x8x128xf32> to vector<128xf32>
    %77 = vector.shape_cast %76 : vector<128xf32> to vector<1x1x1x128xf32>
    %cst_63 = arith.constant 7.812500e-03 : f32
    %78 = vector.broadcast %cst_63 : f32 to vector<1x1x1x128xf32>
    %79 = arith.mulf %74, %78 : vector<1x1x1x128xf32>
    %cst_64 = arith.constant 7.812500e-03 : f32
    %80 = vector.broadcast %cst_64 : f32 to vector<1x1x1x128xf32>
    %81 = arith.mulf %77, %80 : vector<1x1x1x128xf32>
    %82 = arith.mulf %79, %79 : vector<1x1x1x128xf32>
    %83 = arith.subf %81, %82 : vector<1x1x1x128xf32>
    %cst_65 = arith.constant 1.000000e-03 : f32
    %84 = vector.broadcast %cst_65 : f32 to vector<1x1x1x128xf32>
    %85 = arith.addf %83, %84 : vector<1x1x1x128xf32>
    %86 = math.rsqrt %85 : vector<1x1x1x128xf32>
    %c0_66 = arith.constant 0 : index
    %c0_67 = arith.constant 0 : index
    %87 = vector.load %arg3[%c0_66, %c0_67] : memref<1x128xf32, #tpu.memory_space<vmem>>, vector<1x128xf32>
    %88 = vector.shape_cast %87 : vector<1x128xf32> to vector<128xf32>
    %89 = vector.shape_cast %88 : vector<128xf32> to vector<1x1x1x128xf32>
    %90 = arith.mulf %86, %89 : vector<1x1x1x128xf32>
    %c0_68 = arith.constant 0 : index
    %c0_69 = arith.constant 0 : index
    %91 = vector.load %arg4[%c0_68, %c0_69] : memref<1x128xf32, #tpu.memory_space<vmem>>, vector<1x128xf32>
    %92 = vector.shape_cast %91 : vector<1x128xf32> to vector<128xf32>
    %93 = arith.mulf %79, %90 : vector<1x1x1x128xf32>
    %94 = vector.shape_cast %92 : vector<128xf32> to vector<1x1x1x128xf32>
    %95 = arith.subf %94, %93 : vector<1x1x1x128xf32>
    %96 = vector.broadcast %90 : vector<1x1x1x128xf32> to vector<2x8x8x128xf32>
    %97 = arith.mulf %72, %96 : vector<2x8x8x128xf32>
    %98 = vector.broadcast %95 : vector<1x1x1x128xf32> to vector<2x8x8x128xf32>
    %99 = arith.addf %97, %98 : vector<2x8x8x128xf32>
    %c0_70 = arith.constant 0 : index
    %c0_71 = arith.constant 0 : index
    %c0_72 = arith.constant 0 : index
    %c0_73 = arith.constant 0 : index
    %100 = vector.load %arg5[%c0_70, %c0_71, %c0_72, %c0_73] : memref<2x8x8x128xf32, #tpu.memory_space<vmem>>, vector<2x8x8x128xf32>
    tpu.vector_store %arg5[%c0_70, %c0_71, %c0_72, %c0_73], %99 {strides = array<i32>} : memref<2x8x8x128xf32, #tpu.memory_space<vmem>>, vector<2x8x8x128xf32>,
    return
  }
  func.func @transform_0(%arg0: i32) -> (i32, i32, i32, i32) {
    %c0_i32 = arith.constant 0 : i32
    %c0_i32_0 = arith.constant 0 : i32
    %c0_i32_1 = arith.constant 0 : i32
    %c0_i32_2 = arith.constant 0 : i32
    return %c0_i32, %c0_i32_0, %c0_i32_1, %arg0 : i32, i32, i32, i32
  }
  func.func @transform_1(%arg0: i32) -> (i32, i32, i32) {
    %c0_i32 = arith.constant 0 : i32
    %c0_i32_0 = arith.constant 0 : i32
    %c0_i32_1 = arith.constant 0 : i32
    return %c0_i32, %c0_i32_0, %arg0 : i32, i32, i32
  }
  func.func @transform_2(%arg0: i32) -> (i32, i32) {
    %c0_i32 = arith.constant 0 : i32
    %c0_i32_0 = arith.constant 0 : i32
    return %c0_i32, %arg0 : i32, i32
  }
  func.func @transform_3(%arg0: i32) -> (i32, i32) {
    %c0_i32 = arith.constant 0 : i32
    %c0_i32_0 = arith.constant 0 : i32
    return %c0_i32, %arg0 : i32, i32
  }
  func.func @transform_4(%arg0: i32) -> (i32, i32, i32, i32) {
    %c0_i32 = arith.constant 0 : i32
    %c0_i32_0 = arith.constant 0 : i32
    %c0_i32_1 = arith.constant 0 : i32
    %c0_i32_2 = arith.constant 0 : i32
    return %c0_i32, %c0_i32_0, %c0_i32_1, %arg0 : i32, i32, i32, i32
  }
}

</mosaic_0001>

<llo_original>
// kernel: tpu_custom_call.1
$region0: #{tpu_custom_call.1}
  #allocation0 [shape = 'u32[]', space=smem, size = 0x4, offset = 0x4, fixed_abs, tag = 'smem constant byte address 0x4 - core index']
  #allocation1 [shape = 'u32[72,128]{1,0:T(1,128)}', space=vmem, size = 0x9000, scoped, tag = 'internal scratch']
  #allocation2 [shape = 'f32[2,10,10,128]{3,2,1,0:T(8,128)}', space=vmem, size = 0x28000, scoped, tag = 'scratch operand']
  %s0 = inlined_call_operand.hbm [shape: f32[2,8,8,256], index: 0, kind: input, shape index: {}]
  %s1 = inlined_call_operand.hbm [shape: f32[3,3,256], index: 1, kind: input, shape index: {}]
  %s2 = inlined_call_operand.hbm [shape: f32[1,256], index: 2, kind: input, shape index: {}]
  %s3 = inlined_call_operand.vmem [shape: f32[1,256], index: 3, kind: input, shape index: {}]
  %s4 = inlined_call_operand.hbm [shape: f32[2,8,8,256], index: 4, kind: output, shape index: {}]
  %s5 = sld [smem:[#allocation0]]
  $region61: #{tpu_custom_call.1} parent=0
    _
  %s7 = ssub.s32 1, %s5
  %s8 = scalar_select 0, %s7, %s5
  $region1: #{tpu_custom_call.1} parent=0
    #allocation3 [shape = 'u8[131072]{0}', space=vmem, size = 0x20000, scoped, tag = 'input window, operand 0']
    #allocation4 [shape = 's32[2]{0}', space=sflag, size = 0x8, scoped, tag = 'scoped memory for tpu_custom_call.1']
    #allocation5 [shape = 's32[2]{0}', space=sflag, size = 0x8, scoped, tag = 'scoped memory for tpu_custom_call.1']
    #allocation6 [shape = 'u8[12288]{0}', space=vmem, size = 0x3000, scoped, tag = 'input window, operand 1']
    #allocation7 [shape = 's32[2]{0}', space=sflag, size = 0x8, scoped, tag = 'scoped memory for tpu_custom_call.1']
    #allocation8 [shape = 'u8[1024]{0}', space=vmem, size = 0x400, scoped, tag = 'input window, operand 2']
    #allocation9 [shape = 'u8[131072]{0}', space=vmem, size = 0x20000, scoped, tag = 'output window, operand 0']
    %9 = vsyncpa [#allocation4], 0
    %s10 = scalar_lea.sflag [#allocation4], 1
    %11 = vsyncpa %s10, 0
    %12 = vsyncpa [#allocation7], 0
    %s13 = scalar_lea.sflag [#allocation7], 1
    %14 = vsyncpa %s13, 0
    %15 = vsyncpa [#allocation5], 0
    %s16 = scalar_lea.sflag [#allocation5], 1
    %17 = vsyncpa %s16, 0
    loop: start=0, step=1, limit=4
    $region2: #{tpu_custom_call.1} parent=1 // loop_pre_header
      _
    $region3: #{tpu_custom_call.1} parent=1 // loop_header
      %s19 = sphi 0, %s23
      %p20 = scmp.ge.s32.totalorder %s19, 4
      %s29 = sphi 0, %s31
      %s32 = sphi 0, %s29
      %s33 = sphi 0, %s32
      %s49 = sphi 0, %s33
      %s55 = sphi 0, %s57
      %s58 = sphi 0, %s55
      %s59 = sphi 0, %s58
      %s75 = sphi 0, %s59
      %s81 = sphi 0, %s83
      %s84 = sphi 0, %s81
      %s85 = sphi 0, %s84
      %s101 = sphi 0, %s85
      %s107 = sphi 0, %s109
      %s110 = sphi 0, %s107
      %s111 = sphi 0, %s110
      %s127 = sphi 0, %s111
      %s133 = sphi 0, %s135
      %s136 = sphi 0, %s133
      %s137 = sphi 0, %s136
      %s153 = sphi 0, %s137
    $region4: #{tpu_custom_call.1} parent=1 // loop_header_branch
      %22 = sbr.rel (%p20) target = $region8
    $region5: #{tpu_custom_call.1} parent=1 // loop_body
      %s24 = ssub.s32 %s19, 1
      %s25 = ssub.s32 %s19, 2
      %s26 = sadd.s32 %s19, 1
      %s27 = ssub.s32 %s19, %s26
      %p28 = scmp.eq.s32.totalorder %s27, 0
      %s30 = sadd.s32 %s29, 1
      %s31 = scalar_select %p28, %s29, %s30
      %p34 = pneg %p28
      %p35 = scmp.eq.s32.totalorder %s19, 1
      %p36 = por %p34, %p35
      %p37 = scmp.ne.s32.totalorder %s29, %s32
      %p38 = scmp.eq.s32.totalorder %s19, 0
      %p39 = por %p37, %p38
      %p40 = scmp.ne.s32.totalorder %s29, %s32
      %p41 = scmp.eq.s32.totalorder %s24, 1
      %p42 = por %p40, %p41
      %p43 = scmp.ne.s32.totalorder %s32, %s33
      %p44 = scmp.eq.s32.totalorder %s24, 0
      %p45 = por %p43, %p44
      %p46 = scmp.ne.s32.totalorder %s32, %s33
      %p47 = scmp.eq.s32.totalorder %s25, 1
      %p48 = por %p46, %p47
      %p50 = scmp.ne.s32.totalorder %s33, %s49
      %p51 = scmp.eq.s32.totalorder %s25, 0
      %p52 = por %p50, %p51
      %s53 = ssub.s32 %s19, %s26
      %p54 = scmp.eq.s32.totalorder %s53, 0
      %s56 = sadd.s32 %s55, 1
      %s57 = scalar_select %p54, %s55, %s56
      %p60 = pneg %p54
      %p61 = scmp.eq.s32.totalorder %s19, 1
      %p62 = por %p60, %p61
      %p63 = scmp.ne.s32.totalorder %s55, %s58
      %p64 = scmp.eq.s32.totalorder %s19, 0
      %p65 = por %p63, %p64
      %p66 = scmp.ne.s32.totalorder %s55, %s58
      %p67 = scmp.eq.s32.totalorder %s24, 1
      %p68 = por %p66, %p67
      %p69 = scmp.ne.s32.totalorder %s58, %s59
      %p70 = scmp.eq.s32.totalorder %s24, 0
      %p71 = por %p69, %p70
      %p72 = scmp.ne.s32.totalorder %s58, %s59
      %p73 = scmp.eq.s32.totalorder %s25, 1
      %p74 = por %p72, %p73
      %p76 = scmp.ne.s32.totalorder %s59, %s75
      %p77 = scmp.eq.s32.totalorder %s25, 0
      %p78 = por %p76, %p77
      %s79 = ssub.s32 %s19, %s26
      %p80 = scmp.eq.s32.totalorder %s79, 0
      %s82 = sadd.s32 %s81, 1
      %s83 = scalar_select %p80, %s81, %s82
      %p86 = pneg %p80
      %p87 = scmp.eq.s32.totalorder %s19, 1
      %p88 = por %p86, %p87
      %p89 = scmp.ne.s32.totalorder %s81, %s84
      %p90 = scmp.eq.s32.totalorder %s19, 0
      %p91 = por %p89, %p90
      %p92 = scmp.ne.s32.totalorder %s81, %s84
      %p93 = scmp.eq.s32.totalorder %s24, 1
      %p94 = por %p92, %p93
      %p95 = scmp.ne.s32.totalorder %s84, %s85
      %p96 = scmp.eq.s32.totalorder %s24, 0
      %p97 = por %p95, %p96
      %p98 = scmp.ne.s32.totalorder %s84, %s85
      %p99 = scmp.eq.s32.totalorder %s25, 1
      %p100 = por %p98, %p99
      %p102 = scmp.ne.s32.totalorder %s85, %s101
      %p103 = scmp.eq.s32.totalorder %s25, 0
      %p104 = por %p102, %p103
      %s105 = ssub.s32 %s19, %s26
      %p106 = scmp.eq.s32.totalorder %s105, 0
      %s108 = sadd.s32 %s107, 1
      %s109 = scalar_select %p106, %s107, %s108
      %p112 = pneg %p106
      %p113 = scmp.eq.s32.totalorder %s19, 1
      %p114 = por %p112, %p113
      %p115 = scmp.ne.s32.totalorder %s107, %s110
      %p116 = scmp.eq.s32.totalorder %s19, 0
      %p117 = por %p115, %p116
      %p118 = scmp.ne.s32.totalorder %s107, %s110
      %p119 = scmp.eq.s32.totalorder %s24, 1
      %p120 = por %p118, %p119
      %p121 = scmp.ne.s32.totalorder %s110, %s111
      %p122 = scmp.eq.s32.totalorder %s24, 0
      %p123 = por %p121, %p122
      %p124 = scmp.ne.s32.totalorder %s110, %s111
      %p125 = scmp.eq.s32.totalorder %s25, 1
      %p126 = por %p124, %p125
      %p128 = scmp.ne.s32.totalorder %s111, %s127
      %p129 = scmp.eq.s32.totalorder %s25, 0
      %p130 = por %p128, %p129
      %s131 = ssub.s32 %s19, %s26
      %p132 = scmp.eq.s32.totalorder %s131, 0
      %s134 = sadd.s32 %s133, 1
      %s135 = scalar_select %p132, %s133, %s134
      %p138 = pneg %p132
      %p139 = scmp.eq.s32.totalorder %s19, 1
      %p140 = por %p138, %p139
      %p141 = scmp.ne.s32.totalorder %s133, %s136
      %p142 = scmp.eq.s32.totalorder %s19, 0
      %p143 = por %p141, %p142
      %p144 = scmp.ne.s32.totalorder %s133, %s136
      %p145 = scmp.eq.s32.totalorder %s24, 1
      %p146 = por %p144, %p145
      %p147 = scmp.ne.s32.totalorder %s136, %s137
      %p148 = scmp.eq.s32.totalorder %s24, 0
      %p149 = por %p147, %p148
      %p150 = scmp.ne.s32.totalorder %s136, %s137
      %p151 = scmp.eq.s32.totalorder %s25, 1
      %p152 = por %p150, %p151
      %p154 = scmp.ne.s32.totalorder %s137, %s153
      %p155 = scmp.eq.s32.totalorder %s25, 0
      %p156 = por %p154, %p155
      %p157 = scmp.le.s32.totalorder 1, %s19
      %p158 = scmp.lt.s32.totalorder %s19, 3
      %p159 = pnand %p157, %p158
      %p160 = pneg %p159
      // Predicated region
      $region9: #{tpu_custom_call.1} parent=5 // pred_check
        _
      $region10: #{tpu_custom_call.1} parent=5 // pred_check_branch
        %162 = sbr.rel (%p159) target = $region12
      $region11: #{tpu_custom_call.1} parent=5 // pred_region
        %s163 = ssub.s32 %s19, 1
      $region12: #{tpu_custom_call.1} parent=5 // pred_fallthru
        _
      %p164 = scmp.lt.s32.totalorder %s19, 2
      // Predicated region
      $region13: #{tpu_custom_call.1} parent=5 // pred_check
        %p165 = pneg %p164
      $region14: #{tpu_custom_call.1} parent=5 // pred_check_branch
        %167 = sbr.rel (%p165) target = $region16
      $region15: #{tpu_custom_call.1} parent=5 // pred_region
        // Predicated region
        $region17: #{tpu_custom_call.1} parent=15 // pred_check
          %p168 = pneg %p39
        $region18: #{tpu_custom_call.1} parent=15 // pred_check_branch
          %170 = sbr.rel (%p168) target = $region20
        $region19: #{tpu_custom_call.1} parent=15 // pred_region
          %s171 = sand.u32 %s29, 1
          %s172 = scalar_lea.sflag [#allocation4], %s171
          %s173 = sand.u32 %s29, 1
          %s174 = smul.addr %s173, 128
          %s175 = scalar_lea.vmem [#allocation3], %s174
          %177 = vsyncadd %s172, 0
          %s178 = smul.addr %s19, 8
          %s179 = scalar_lea.hbm %s0, %s178
          %s180 = sshll.u32 %s179, 4
          %s181 = int_to_ptr.hbm [resolvable:$true] %s180
          %s182 = sshll.u32 %s175, 4
          %s183 = int_to_ptr.vmem [resolvable:$true] %s182
          %188 = dma.hbm_to_vmem [thread:$0]  %s181, 2048, %s183, %s172, 256, 128, 8
        $region20: #{tpu_custom_call.1} parent=15 // pred_fallthru
          _
        // Predicated region
        $region21: #{tpu_custom_call.1} parent=15 // pred_check
          %p189 = pneg %p65
        $region22: #{tpu_custom_call.1} parent=15 // pred_check_branch
          %191 = sbr.rel (%p189) target = $region24
        $region23: #{tpu_custom_call.1} parent=15 // pred_region
          %s192 = sand.u32 %s19, 1
          %s193 = scalar_lea.sflag [#allocation7], %s192
          %s194 = sand.u32 %s55, 1
          %s195 = smul.addr %s194, 12
          %s196 = scalar_lea.vmem [#allocation6], %s195
          %198 = vsyncadd %s193, 0
          %s199 = smul.addr %s19, 4
          %s200 = scalar_lea.hbm %s1, %s199
          %s201 = sshll.u32 %s200, 4
          %s202 = int_to_ptr.hbm [resolvable:$true] %s201
          %s203 = sshll.u32 %s196, 4
          %s204 = int_to_ptr.vmem [resolvable:$true] %s203
          %209 = dma.hbm_to_vmem [thread:$0]  %s202, 192, %s204, %s193, 128, 64, 4
        $region24: #{tpu_custom_call.1} parent=15 // pred_fallthru
          _
        // Predicated region
        $region25: #{tpu_custom_call.1} parent=15 // pred_check
          %p210 = pneg %p91
        $region26: #{tpu_custom_call.1} parent=15 // pred_check_branch
          %212 = sbr.rel (%p210) target = $region28
        $region27: #{tpu_custom_call.1} parent=15 // pred_region
          %s213 = sand.u32 %s19, 1
          %s214 = scalar_lea.sflag [#allocation7], %s213
          %s215 = sand.u32 %s81, 1
          %s216 = scalar_lea.vmem [#allocation8], %s215
          %218 = vsyncadd %s214, 0
          %s219 = scalar_lea.hbm %s2, %s19
          %s221 = sshll.u32 %s219, 4
          %s222 = int_to_ptr.hbm [resolvable:$true] %s221
          %s223 = sshll.u32 %s216, 4
          %s224 = int_to_ptr.vmem [resolvable:$true] %s223
          %226 = dma.hbm_to_vmem [thread:$0]  %s222, 16, %s224, %s214
        $region28: #{tpu_custom_call.1} parent=15 // pred_fallthru
          _
        // Predicated region
        $region29: #{tpu_custom_call.1} parent=15 // pred_check
          %p227 = pneg %p117
        $region30: #{tpu_custom_call.1} parent=15 // pred_check_branch
          %229 = sbr.rel (%p227) target = $region32
        $region31: #{tpu_custom_call.1} parent=15 // pred_region
          %p230 = scmp.lt.s32.totalorder %s19, 1
          %s231 = scalar_select %p230, %s19, 1
          %s232 = scalar_lea.vmem %s3, %s231
        $region32: #{tpu_custom_call.1} parent=15 // pred_fallthru
          _
      $region16: #{tpu_custom_call.1} parent=5 // pred_fallthru
        _
      %p233 = scmp.le.s32.totalorder 1, %s19
      %p234 = scmp.lt.s32.totalorder %s19, 3
      %p235 = pnand %p233, %p234
      %p236 = pneg %p235
      // Predicated region
      $region33: #{tpu_custom_call.1} parent=5 // pred_check
        _
      $region34: #{tpu_custom_call.1} parent=5 // pred_check_branch
        %238 = sbr.rel (%p235) target = $region36
      $region35: #{tpu_custom_call.1} parent=5 // pred_region
        %s239 = ssub.s32 %s19, 1
        %s240 = sand.u32 %s32, 1
        %s241 = scalar_lea.sflag [#allocation4], %s240
        %s242 = sand.u32 %s32, 1
        %s243 = smul.addr %s242, 128
        %s244 = scalar_lea.vmem [#allocation3], %s243
        // Predicated region
        $region37: #{tpu_custom_call.1} parent=35 // pred_check
          %p245 = pneg %p45
        $region38: #{tpu_custom_call.1} parent=35 // pred_check_branch
          %247 = sbr.rel (%p245) target = $region40
        $region39: #{tpu_custom_call.1} parent=35 // pred_region
          %249 = dma.done %s241, 2048
        $region40: #{tpu_custom_call.1} parent=35 // pred_fallthru
          _
        %s250 = sand.u32 %s24, 1
        %s251 = scalar_lea.sflag [#allocation7], %s250
        %s252 = sand.u32 %s58, 1
        %s253 = smul.addr %s252, 12
        %s254 = scalar_lea.vmem [#allocation6], %s253
        // Predicated region
        $region41: #{tpu_custom_call.1} parent=35 // pred_check
          %p255 = pneg %p71
        $region42: #{tpu_custom_call.1} parent=35 // pred_check_branch
          %257 = sbr.rel (%p255) target = $region44
        $region43: #{tpu_custom_call.1} parent=35 // pred_region
          %259 = dma.done %s251, 192
        $region44: #{tpu_custom_call.1} parent=35 // pred_fallthru
          _
        %s260 = sand.u32 %s24, 1
        %s261 = scalar_lea.sflag [#allocation7], %s260
        %s262 = sand.u32 %s84, 1
        %s263 = scalar_lea.vmem [#allocation8], %s262
        // Predicated region
        $region45: #{tpu_custom_call.1} parent=35 // pred_check
          %p264 = pneg %p97
        $region46: #{tpu_custom_call.1} parent=35 // pred_check_branch
          %266 = sbr.rel (%p264) target = $region48
        $region47: #{tpu_custom_call.1} parent=35 // pred_region
          %268 = dma.done %s261, 16
        $region48: #{tpu_custom_call.1} parent=35 // pred_fallthru
          _
        %s269 = sand.u32 %s32, 1
        %s270 = scalar_lea.sflag [#allocation4], %s269
        %s271 = sand.u32 %s32, 1
        %s272 = smul.addr %s271, 128
        %s273 = scalar_lea.vmem [#allocation3], %s272
        %p274 = pneg %p45
        %p275 = pneg %p42
        %s276 = sand.u32 %s24, 1
        %s277 = scalar_lea.sflag [#allocation7], %s276
        %s278 = sand.u32 %s58, 1
        %s279 = smul.addr %s278, 12
        %s280 = scalar_lea.vmem [#allocation6], %s279
        %p281 = pneg %p71
        %p282 = pneg %p68
        %s283 = sand.u32 %s24, 1
        %s284 = scalar_lea.sflag [#allocation7], %s283
        %s285 = sand.u32 %s84, 1
        %s286 = scalar_lea.vmem [#allocation8], %s285
        %p287 = pneg %p97
        %p288 = pneg %p94
        %p289 = scmp.lt.s32.totalorder %s24, 1
        %s290 = scalar_select %p289, %s24, 1
        %s291 = scalar_lea.vmem %s3, %s290
        %p292 = pneg %p123
        %p293 = pneg %p120
        %p294 = pneg %p149
        %p295 = pneg %p146
        %s296 = sand.u32 %s136, 1
        %s297 = scalar_lea.sflag [#allocation5], %s296
        %s298 = sand.u32 %s136, 1
        %s299 = smul.addr %s298, 128
        %s300 = scalar_lea.vmem [#allocation9], %s299
        %p301 = scmp.lt.s32.totalorder %s24, 1
        %s302 = scalar_select %p301, %s24, 1
        %s303 = scalar_lea.vmem %s3, %s302
        %304 = vst [vmem:[#allocation2] sm:$0xff] 0.0
        %305 = vst [vmem:[#allocation2 + $0x8] sm:$0x3] 0.0
        %306 = vst [vmem:[#allocation2 + $0xa0] sm:$0xff] 0.0
        %307 = vst [vmem:[#allocation2 + $0xa8] sm:$0x3] 0.0
        %s308 = scalar_lea.vmem [#allocation2], 144
        %309 = vst [vmem:[%s308] sm:$0xff] 0.0
        %310 = vst [vmem:[%s308 + $0x8] sm:$0x3] 0.0
        %311 = vst [vmem:[%s308 + $0xa0] sm:$0xff] 0.0
        %312 = vst [vmem:[%s308 + $0xa8] sm:$0x3] 0.0
        %s313 = scalar_lea.vmem [#allocation2], 16
        %314 = vst [vmem:[%s313] sm:$0x1] 0.0
        %315 = vst [vmem:[%s313 + $0x10] sm:$0x1] 0.0
        %316 = vst [vmem:[%s313 + $0x20] sm:$0x1] 0.0
        %317 = vst [vmem:[%s313 + $0x30] sm:$0x1] 0.0
        %318 = vst [vmem:[%s313 + $0x40] sm:$0x1] 0.0
        %319 = vst [vmem:[%s313 + $0x50] sm:$0x1] 0.0
        %320 = vst [vmem:[%s313 + $0x60] sm:$0x1] 0.0
        %321 = vst [vmem:[%s313 + $0x70] sm:$0x1] 0.0
        %322 = vst [vmem:[%s313 + $0xa0] sm:$0x1] 0.0
        %323 = vst [vmem:[%s313 + $0xb0] sm:$0x1] 0.0
        %324 = vst [vmem:[%s313 + $0xc0] sm:$0x1] 0.0
        %325 = vst [vmem:[%s313 + $0xd0] sm:$0x1] 0.0
        %326 = vst [vmem:[%s313 + $0xe0] sm:$0x1] 0.0
        %327 = vst [vmem:[%s313 + $0xf0] sm:$0x1] 0.0
        %328 = vst [vmem:[%s313 + $0x100] sm:$0x1] 0.0
        %329 = vst [vmem:[%s313 + $0x110] sm:$0x1] 0.0
        %330 = vst [vmem:[%s313 + $0x9] sm:$0x1] 0.0
        %331 = vst [vmem:[%s313 + $0x19] sm:$0x1] 0.0
        %332 = vst [vmem:[%s313 + $0x29] sm:$0x1] 0.0
        %333 = vst [vmem:[%s313 + $0x39] sm:$0x1] 0.0
        %334 = vst [vmem:[%s313 + $0x49] sm:$0x1] 0.0
        %335 = vst [vmem:[%s313 + $0x59] sm:$0x1] 0.0
        %336 = vst [vmem:[%s313 + $0x69] sm:$0x1] 0.0
        %337 = vst [vmem:[%s313 + $0x79] sm:$0x1] 0.0
        %338 = vst [vmem:[%s313 + $0xa9] sm:$0x1] 0.0
        %339 = vst [vmem:[%s313 + $0xb9] sm:$0x1] 0.0
        %340 = vst [vmem:[%s313 + $0xc9] sm:$0x1] 0.0
        %341 = vst [vmem:[%s313 + $0xd9] sm:$0x1] 0.0
        %342 = vst [vmem:[%s313 + $0xe9] sm:$0x1] 0.0
        %343 = vst [vmem:[%s313 + $0xf9] sm:$0x1] 0.0
        %344 = vst [vmem:[%s313 + $0x109] sm:$0x1] 0.0
        %345 = vst [vmem:[%s313 + $0x119] sm:$0x1] 0.0
        %v346 = vld [vmem:[%s244] sm:$0xff]
        %v347 = vld [vmem:[%s244 + $0x8] sm:$0xff]
        %v348 = vld [vmem:[%s244 + $0x10] sm:$0xff]
        %v349 = vld [vmem:[%s244 + $0x18] sm:$0xff]
        %v350 = vld [vmem:[%s244 + $0x20] sm:$0xff]
        %v351 = vld [vmem:[%s244 + $0x28] sm:$0xff]
        %v352 = vld [vmem:[%s244 + $0x30] sm:$0xff]
        %v353 = vld [vmem:[%s244 + $0x38] sm:$0xff]
        %v354 = vld [vmem:[%s244 + $0x40] sm:$0xff]
        %v355 = vld [vmem:[%s244 + $0x48] sm:$0xff]
        %v356 = vld [vmem:[%s244 + $0x50] sm:$0xff]
        %v357 = vld [vmem:[%s244 + $0x58] sm:$0xff]
        %v358 = vld [vmem:[%s244 + $0x60] sm:$0xff]
        %v359 = vld [vmem:[%s244 + $0x68] sm:$0xff]
        %v360 = vld [vmem:[%s244 + $0x70] sm:$0xff]
        %v361 = vld [vmem:[%s244 + $0x78] sm:$0xff]
        %362 = vst [vmem:[%s313 + $0x1] sm:$0xff] %v346
        %363 = vst [vmem:[%s313 + $0x11] sm:$0xff] %v347
        %364 = vst [vmem:[%s313 + $0x21] sm:$0xff] %v348
        %365 = vst [vmem:[%s313 + $0x31] sm:$0xff] %v349
        %366 = vst [vmem:[%s313 + $0x41] sm:$0xff] %v350
        %367 = vst [vmem:[%s313 + $0x51] sm:$0xff] %v351
        %368 = vst [vmem:[%s313 + $0x61] sm:$0xff] %v352
        %369 = vst [vmem:[%s313 + $0x71] sm:$0xff] %v353
        %370 = vst [vmem:[%s313 + $0xa1] sm:$0xff] %v354
        %371 = vst [vmem:[%s313 + $0xb1] sm:$0xff] %v355
        %372 = vst [vmem:[%s313 + $0xc1] sm:$0xff] %v356
        %373 = vst [vmem:[%s313 + $0xd1] sm:$0xff] %v357
        %374 = vst [vmem:[%s313 + $0xe1] sm:$0xff] %v358
        %375 = vst [vmem:[%s313 + $0xf1] sm:$0xff] %v359
        %376 = vst [vmem:[%s313 + $0x101] sm:$0xff] %v360
        %377 = vst [vmem:[%s313 + $0x111] sm:$0xff] %v361
        %v378 = vld [vmem:[%s254] sm:$0x7]
        %v379 = vld [vmem:[%s254 + $0x4] sm:$0x7]
        %v380 = vld [vmem:[%s254 + $0x8] sm:$0x7]
        %v381 = vld [vmem:[#allocation2] sm:$0xff]
        %v382 = vld [vmem:[#allocation2 + $0x10] sm:$0xff]
        %v383 = vld [vmem:[#allocation2 + $0x20] sm:$0xff]
        %v384 = vld [vmem:[#allocation2 + $0x30] sm:$0xff]
        %v385 = vld [vmem:[#allocation2 + $0x40] sm:$0xff]
        %v386 = vld [vmem:[#allocation2 + $0x50] sm:$0xff]
        %v387 = vld [vmem:[#allocation2 + $0x60] sm:$0xff]
        %v388 = vld [vmem:[#allocation2 + $0x70] sm:$0xff]
        %v389 = vld [vmem:[#allocation2 + $0xa0] sm:$0xff]
        %v390 = vld [vmem:[#allocation2 + $0xb0] sm:$0xff]
        %v391 = vld [vmem:[#allocation2 + $0xc0] sm:$0xff]
        %v392 = vld [vmem:[#allocation2 + $0xd0] sm:$0xff]
        %v393 = vld [vmem:[#allocation2 + $0xe0] sm:$0xff]
        %v394 = vld [vmem:[#allocation2 + $0xf0] sm:$0xff]
        %v395 = vld [vmem:[#allocation2 + $0x100] sm:$0xff]
        %v396 = vld [vmem:[#allocation2 + $0x110] sm:$0xff]
        %v397 = vperm.slane %v378, 0
        %v398 = vmul.f32 %v381, %v397
        %v399 = vmul.f32 %v382, %v397
        %v400 = vmul.f32 %v383, %v397
        %v401 = vmul.f32 %v384, %v397
        %v402 = vmul.f32 %v385, %v397
        %v403 = vmul.f32 %v386, %v397
        %v404 = vmul.f32 %v387, %v397
        %v405 = vmul.f32 %v388, %v397
        %v406 = vmul.f32 %v389, %v397
        %v407 = vmul.f32 %v390, %v397
        %v408 = vmul.f32 %v391, %v397
        %v409 = vmul.f32 %v392, %v397
        %v410 = vmul.f32 %v393, %v397
        %v411 = vmul.f32 %v394, %v397
        %v412 = vmul.f32 %v395, %v397
        %v413 = vmul.f32 %v396, %v397
        %v414 = vadd.f32 %v398, 0.0
        %v415 = vadd.f32 %v399, 0.0
        %v416 = vadd.f32 %v400, 0.0
        %v417 = vadd.f32 %v401, 0.0
        %v418 = vadd.f32 %v402, 0.0
        %v419 = vadd.f32 %v403, 0.0
        %v420 = vadd.f32 %v404, 0.0
        %v421 = vadd.f32 %v405, 0.0
        %v422 = vadd.f32 %v406, 0.0
        %v423 = vadd.f32 %v407, 0.0
        %v424 = vadd.f32 %v408, 0.0
        %v425 = vadd.f32 %v409, 0.0
        %v426 = vadd.f32 %v410, 0.0
        %v427 = vadd.f32 %v411, 0.0
        %v428 = vadd.f32 %v412, 0.0
        %v429 = vadd.f32 %v413, 0.0
        %v430 = vld [vmem:[#allocation2 + $0x1] sm:$0xff]
        %v431 = vld [vmem:[#allocation2 + $0x11] sm:$0xff]
        %v432 = vld [vmem:[#allocation2 + $0x21] sm:$0xff]
        %v433 = vld [vmem:[#allocation2 + $0x31] sm:$0xff]
        %v434 = vld [vmem:[#allocation2 + $0x41] sm:$0xff]
        %v435 = vld [vmem:[#allocation2 + $0x51] sm:$0xff]
        %v436 = vld [vmem:[#allocation2 + $0x61] sm:$0xff]
        %v437 = vld [vmem:[#allocation2 + $0x71] sm:$0xff]
        %v438 = vld [vmem:[#allocation2 + $0xa1] sm:$0xff]
        %v439 = vld [vmem:[#allocation2 + $0xb1] sm:$0xff]
        %v440 = vld [vmem:[#allocation2 + $0xc1] sm:$0xff]
        %v441 = vld [vmem:[#allocation2 + $0xd1] sm:$0xff]
        %v442 = vld [vmem:[#allocation2 + $0xe1] sm:$0xff]
        %v443 = vld [vmem:[#allocation2 + $0xf1] sm:$0xff]
        %v444 = vld [vmem:[#allocation2 + $0x101] sm:$0xff]
        %v445 = vld [vmem:[#allocation2 + $0x111] sm:$0xff]
        %v446 = vperm.slane %v378, 1
        %v447 = vmul.f32 %v430, %v446
        %v448 = vmul.f32 %v431, %v446
        %v449 = vmul.f32 %v432, %v446
        %v450 = vmul.f32 %v433, %v446
        %v451 = vmul.f32 %v434, %v446
        %v452 = vmul.f32 %v435, %v446
        %v453 = vmul.f32 %v436, %v446
        %v454 = vmul.f32 %v437, %v446
        %v455 = vmul.f32 %v438, %v446
        %v456 = vmul.f32 %v439, %v446
        %v457 = vmul.f32 %v440, %v446
        %v458 = vmul.f32 %v441, %v446
        %v459 = vmul.f32 %v442, %v446
        %v460 = vmul.f32 %v443, %v446
        %v461 = vmul.f32 %v444, %v446
        %v462 = vmul.f32 %v445, %v446
        %v463 = vadd.f32 %v414, %v447
        %v464 = vadd.f32 %v415, %v448
        %v465 = vadd.f32 %v416, %v449
        %v466 = vadd.f32 %v417, %v450
        %v467 = vadd.f32 %v418, %v451
        %v468 = vadd.f32 %v419, %v452
        %v469 = vadd.f32 %v420, %v453
        %v470 = vadd.f32 %v421, %v454
        %v471 = vadd.f32 %v422, %v455
        %v472 = vadd.f32 %v423, %v456
        %v473 = vadd.f32 %v424, %v457
        %v474 = vadd.f32 %v425, %v458
        %v475 = vadd.f32 %v426, %v459
        %v476 = vadd.f32 %v427, %v460
        %v477 = vadd.f32 %v428, %v461
        %v478 = vadd.f32 %v429, %v462
        %v479 = vld [vmem:[#allocation2 + $0x2] sm:$0xff]
        %v480 = vld [vmem:[#allocation2 + $0x12] sm:$0xff]
        %v481 = vld [vmem:[#allocation2 + $0x22] sm:$0xff]
        %v482 = vld [vmem:[#allocation2 + $0x32] sm:$0xff]
        %v483 = vld [vmem:[#allocation2 + $0x42] sm:$0xff]
        %v484 = vld [vmem:[#allocation2 + $0x52] sm:$0xff]
        %v485 = vld [vmem:[#allocation2 + $0x62] sm:$0xff]
        %v486 = vld [vmem:[#allocation2 + $0x72] sm:$0xff]
        %v487 = vld [vmem:[#allocation2 + $0xa2] sm:$0xff]
        %v488 = vld [vmem:[#allocation2 + $0xb2] sm:$0xff]
        %v489 = vld [vmem:[#allocation2 + $0xc2] sm:$0xff]
        %v490 = vld [vmem:[#allocation2 + $0xd2] sm:$0xff]
        %v491 = vld [vmem:[#allocation2 + $0xe2] sm:$0xff]
        %v492 = vld [vmem:[#allocation2 + $0xf2] sm:$0xff]
        %v493 = vld [vmem:[#allocation2 + $0x102] sm:$0xff]
        %v494 = vld [vmem:[#allocation2 + $0x112] sm:$0xff]
        %v495 = vperm.slane %v378, 2
        %v496 = vmul.f32 %v479, %v495
        %v497 = vmul.f32 %v480, %v495
        %v498 = vmul.f32 %v481, %v495
        %v499 = vmul.f32 %v482, %v495
        %v500 = vmul.f32 %v483, %v495
        %v501 = vmul.f32 %v484, %v495
        %v502 = vmul.f32 %v485, %v495
        %v503 = vmul.f32 %v486, %v495
        %v504 = vmul.f32 %v487, %v495
        %v505 = vmul.f32 %v488, %v495
        %v506 = vmul.f32 %v489, %v495
        %v507 = vmul.f32 %v490, %v495
        %v508 = vmul.f32 %v491, %v495
        %v509 = vmul.f32 %v492, %v495
        %v510 = vmul.f32 %v493, %v495
        %v511 = vmul.f32 %v494, %v495
        %v512 = vadd.f32 %v463, %v496
        %v513 = vadd.f32 %v464, %v497
        %v514 = vadd.f32 %v465, %v498
        %v515 = vadd.f32 %v466, %v499
        %v516 = vadd.f32 %v467, %v500
        %v517 = vadd.f32 %v468, %v501
        %v518 = vadd.f32 %v469, %v502
        %v519 = vadd.f32 %v470, %v503
        %v520 = vadd.f32 %v471, %v504
        %v521 = vadd.f32 %v472, %v505
        %v522 = vadd.f32 %v473, %v506
        %v523 = vadd.f32 %v474, %v507
        %v524 = vadd.f32 %v475, %v508
        %v525 = vadd.f32 %v476, %v509
        %v526 = vadd.f32 %v477, %v510
        %v527 = vadd.f32 %v478, %v511
        %v528 = vld [vmem:[%s313] sm:$0xff]
        %v529 = vld [vmem:[%s313 + $0x10] sm:$0xff]
        %v530 = vld [vmem:[%s313 + $0x20] sm:$0xff]
        %v531 = vld [vmem:[%s313 + $0x30] sm:$0xff]
        %v532 = vld [vmem:[%s313 + $0x40] sm:$0xff]
        %v533 = vld [vmem:[%s313 + $0x50] sm:$0xff]
        %v534 = vld [vmem:[%s313 + $0x60] sm:$0xff]
        %v535 = vld [vmem:[%s313 + $0x70] sm:$0xff]
        %v536 = vld [vmem:[%s313 + $0xa0] sm:$0xff]
        %v537 = vld [vmem:[%s313 + $0xb0] sm:$0xff]
        %v538 = vld [vmem:[%s313 + $0xc0] sm:$0xff]
        %v539 = vld [vmem:[%s313 + $0xd0] sm:$0xff]
        %v540 = vld [vmem:[%s313 + $0xe0] sm:$0xff]
        %v541 = vld [vmem:[%s313 + $0xf0] sm:$0xff]
        %v542 = vld [vmem:[%s313 + $0x100] sm:$0xff]
        %v543 = vld [vmem:[%s313 + $0x110] sm:$0xff]
        %v544 = vperm.slane %v379, 0
        %v545 = vmul.f32 %v528, %v544
        %v546 = vmul.f32 %v529, %v544
        %v547 = vmul.f32 %v530, %v544
        %v548 = vmul.f32 %v531, %v544
        %v549 = vmul.f32 %v532, %v544
        %v550 = vmul.f32 %v533, %v544
        %v551 = vmul.f32 %v534, %v544
        %v552 = vmul.f32 %v535, %v544
        %v553 = vmul.f32 %v536, %v544
        %v554 = vmul.f32 %v537, %v544
        %v555 = vmul.f32 %v538, %v544
        %v556 = vmul.f32 %v539, %v544
        %v557 = vmul.f32 %v540, %v544
        %v558 = vmul.f32 %v541, %v544
        %v559 = vmul.f32 %v542, %v544
        %v560 = vmul.f32 %v543, %v544
        %v561 = vadd.f32 %v512, %v545
        %v562 = vadd.f32 %v513, %v546
        %v563 = vadd.f32 %v514, %v547
        %v564 = vadd.f32 %v515, %v548
        %v565 = vadd.f32 %v516, %v549
        %v566 = vadd.f32 %v517, %v550
        %v567 = vadd.f32 %v518, %v551
        %v568 = vadd.f32 %v519, %v552
        %v569 = vadd.f32 %v520, %v553
        %v570 = vadd.f32 %v521, %v554
        %v571 = vadd.f32 %v522, %v555
        %v572 = vadd.f32 %v523, %v556
        %v573 = vadd.f32 %v524, %v557
        %v574 = vadd.f32 %v525, %v558
        %v575 = vadd.f32 %v526, %v559
        %v576 = vadd.f32 %v527, %v560
        %v577 = vld [vmem:[%s313 + $0x1] sm:$0xff]
        %v578 = vld [vmem:[%s313 + $0x11] sm:$0xff]
        %v579 = vld [vmem:[%s313 + $0x21] sm:$0xff]
        %v580 = vld [vmem:[%s313 + $0x31] sm:$0xff]
        %v581 = vld [vmem:[%s313 + $0x41] sm:$0xff]
        %v582 = vld [vmem:[%s313 + $0x51] sm:$0xff]
        %v583 = vld [vmem:[%s313 + $0x61] sm:$0xff]
        %v584 = vld [vmem:[%s313 + $0x71] sm:$0xff]
        %v585 = vld [vmem:[%s313 + $0xa1] sm:$0xff]
        %v586 = vld [vmem:[%s313 + $0xb1] sm:$0xff]
        %v587 = vld [vmem:[%s313 + $0xc1] sm:$0xff]
        %v588 = vld [vmem:[%s313 + $0xd1] sm:$0xff]
        %v589 = vld [vmem:[%s313 + $0xe1] sm:$0xff]
        %v590 = vld [vmem:[%s313 + $0xf1] sm:$0xff]
        %v591 = vld [vmem:[%s313 + $0x101] sm:$0xff]
        %v592 = vld [vmem:[%s313 + $0x111] sm:$0xff]
        %v593 = vperm.slane %v379, 1
        %v594 = vmul.f32 %v577, %v593
        %v595 = vmul.f32 %v578, %v593
        %v596 = vmul.f32 %v579, %v593
        %v597 = vmul.f32 %v580, %v593
        %v598 = vmul.f32 %v581, %v593
        %v599 = vmul.f32 %v582, %v593
        %v600 = vmul.f32 %v583, %v593
        %v601 = vmul.f32 %v584, %v593
        %v602 = vmul.f32 %v585, %v593
        %v603 = vmul.f32 %v586, %v593
        %v604 = vmul.f32 %v587, %v593
        %v605 = vmul.f32 %v588, %v593
        %v606 = vmul.f32 %v589, %v593
        %v607 = vmul.f32 %v590, %v593
        %v608 = vmul.f32 %v591, %v593
        %v609 = vmul.f32 %v592, %v593
        %v610 = vadd.f32 %v561, %v594
        %v611 = vadd.f32 %v562, %v595
        %v612 = vadd.f32 %v563, %v596
        %v613 = vadd.f32 %v564, %v597
        %v614 = vadd.f32 %v565, %v598
        %v615 = vadd.f32 %v566, %v599
        %v616 = vadd.f32 %v567, %v600
        %v617 = vadd.f32 %v568, %v601
        %v618 = vadd.f32 %v569, %v602
        %v619 = vadd.f32 %v570, %v603
        %v620 = vadd.f32 %v571, %v604
        %v621 = vadd.f32 %v572, %v605
        %v622 = vadd.f32 %v573, %v606
        %v623 = vadd.f32 %v574, %v607
        %v624 = vadd.f32 %v575, %v608
        %v625 = vadd.f32 %v576, %v609
        %v626 = vld [vmem:[%s313 + $0x2] sm:$0xff]
        %v627 = vld [vmem:[%s313 + $0x12] sm:$0xff]
        %v628 = vld [vmem:[%s313 + $0x22] sm:$0xff]
        %v629 = vld [vmem:[%s313 + $0x32] sm:$0xff]
        %v630 = vld [vmem:[%s313 + $0x42] sm:$0xff]
        %v631 = vld [vmem:[%s313 + $0x52] sm:$0xff]
        %v632 = vld [vmem:[%s313 + $0x62] sm:$0xff]
        %v633 = vld [vmem:[%s313 + $0x72] sm:$0xff]
        %v634 = vld [vmem:[%s313 + $0xa2] sm:$0xff]
        %v635 = vld [vmem:[%s313 + $0xb2] sm:$0xff]
        %v636 = vld [vmem:[%s313 + $0xc2] sm:$0xff]
        %v637 = vld [vmem:[%s313 + $0xd2] sm:$0xff]
        %v638 = vld [vmem:[%s313 + $0xe2] sm:$0xff]
        %v639 = vld [vmem:[%s313 + $0xf2] sm:$0xff]
        %v640 = vld [vmem:[%s313 + $0x102] sm:$0xff]
        %v641 = vld [vmem:[%s313 + $0x112] sm:$0xff]
        %v642 = vperm.slane %v379, 2
        %v643 = vmul.f32 %v626, %v642
        %v644 = vmul.f32 %v627, %v642
        %v645 = vmul.f32 %v628, %v642
        %v646 = vmul.f32 %v629, %v642
        %v647 = vmul.f32 %v630, %v642
        %v648 = vmul.f32 %v631, %v642
        %v649 = vmul.f32 %v632, %v642
        %v650 = vmul.f32 %v633, %v642
        %v651 = vmul.f32 %v634, %v642
        %v652 = vmul.f32 %v635, %v642
        %v653 = vmul.f32 %v636, %v642
        %v654 = vmul.f32 %v637, %v642
        %v655 = vmul.f32 %v638, %v642
        %v656 = vmul.f32 %v639, %v642
        %v657 = vmul.f32 %v640, %v642
        %v658 = vmul.f32 %v641, %v642
        %v659 = vadd.f32 %v610, %v643
        %v660 = vadd.f32 %v611, %v644
        %v661 = vadd.f32 %v612, %v645
        %v662 = vadd.f32 %v613, %v646
        %v663 = vadd.f32 %v614, %v647
        %v664 = vadd.f32 %v615, %v648
        %v665 = vadd.f32 %v616, %v649
        %v666 = vadd.f32 %v617, %v650
        %v667 = vadd.f32 %v618, %v651
        %v668 = vadd.f32 %v619, %v652
        %v669 = vadd.f32 %v620, %v653
        %v670 = vadd.f32 %v621, %v654
        %v671 = vadd.f32 %v622, %v655
        %v672 = vadd.f32 %v623, %v656
        %v673 = vadd.f32 %v624, %v657
        %v674 = vadd.f32 %v625, %v658
        %s675 = scalar_lea.vmem [#allocation2], 32
        %v676 = vld [vmem:[%s675] sm:$0xff]
        %v677 = vld [vmem:[%s675 + $0x10] sm:$0xff]
        %v678 = vld [vmem:[%s675 + $0x20] sm:$0xff]
        %v679 = vld [vmem:[%s675 + $0x30] sm:$0xff]
        %v680 = vld [vmem:[%s675 + $0x40] sm:$0xff]
        %v681 = vld [vmem:[%s675 + $0x50] sm:$0xff]
        %v682 = vld [vmem:[%s675 + $0x60] sm:$0xff]
        %v683 = vld [vmem:[%s675 + $0x70] sm:$0xff]
        %v684 = vld [vmem:[%s675 + $0xa0] sm:$0xff]
        %v685 = vld [vmem:[%s675 + $0xb0] sm:$0xff]
        %v686 = vld [vmem:[%s675 + $0xc0] sm:$0xff]
        %v687 = vld [vmem:[%s675 + $0xd0] sm:$0xff]
        %v688 = vld [vmem:[%s675 + $0xe0] sm:$0xff]
        %v689 = vld [vmem:[%s675 + $0xf0] sm:$0xff]
        %v690 = vld [vmem:[%s675 + $0x100] sm:$0xff]
        %v691 = vld [vmem:[%s675 + $0x110] sm:$0xff]
        %v692 = vperm.slane %v380, 0
        %v693 = vmul.f32 %v676, %v692
        %v694 = vmul.f32 %v677, %v692
        %v695 = vmul.f32 %v678, %v692
        %v696 = vmul.f32 %v679, %v692
        %v697 = vmul.f32 %v680, %v692
        %v698 = vmul.f32 %v681, %v692
        %v699 = vmul.f32 %v682, %v692
        %v700 = vmul.f32 %v683, %v692
        %v701 = vmul.f32 %v684, %v692
        %v702 = vmul.f32 %v685, %v692
        %v703 = vmul.f32 %v686, %v692
        %v704 = vmul.f32 %v687, %v692
        %v705 = vmul.f32 %v688, %v692
        %v706 = vmul.f32 %v689, %v692
        %v707 = vmul.f32 %v690, %v692
        %v708 = vmul.f32 %v691, %v692
        %v709 = vadd.f32 %v659, %v693
        %v710 = vadd.f32 %v660, %v694
        %v711 = vadd.f32 %v661, %v695
        %v712 = vadd.f32 %v662, %v696
        %v713 = vadd.f32 %v663, %v697
        %v714 = vadd.f32 %v664, %v698
        %v715 = vadd.f32 %v665, %v699
        %v716 = vadd.f32 %v666, %v700
        %v717 = vadd.f32 %v667, %v701
        %v718 = vadd.f32 %v668, %v702
        %v719 = vadd.f32 %v669, %v703
        %v720 = vadd.f32 %v670, %v704
        %v721 = vadd.f32 %v671, %v705
        %v722 = vadd.f32 %v672, %v706
        %v723 = vadd.f32 %v673, %v707
        %v724 = vadd.f32 %v674, %v708
        %v725 = vld [vmem:[%s675 + $0x1] sm:$0xff]
        %v726 = vld [vmem:[%s675 + $0x11] sm:$0xff]
        %v727 = vld [vmem:[%s675 + $0x21] sm:$0xff]
        %v728 = vld [vmem:[%s675 + $0x31] sm:$0xff]
        %v729 = vld [vmem:[%s675 + $0x41] sm:$0xff]
        %v730 = vld [vmem:[%s675 + $0x51] sm:$0xff]
        %v731 = vld [vmem:[%s675 + $0x61] sm:$0xff]
        %v732 = vld [vmem:[%s675 + $0x71] sm:$0xff]
        %v733 = vld [vmem:[%s675 + $0xa1] sm:$0xff]
        %v734 = vld [vmem:[%s675 + $0xb1] sm:$0xff]
        %v735 = vld [vmem:[%s675 + $0xc1] sm:$0xff]
        %v736 = vld [vmem:[%s675 + $0xd1] sm:$0xff]
        %v737 = vld [vmem:[%s675 + $0xe1] sm:$0xff]
        %v738 = vld [vmem:[%s675 + $0xf1] sm:$0xff]
        %v739 = vld [vmem:[%s675 + $0x101] sm:$0xff]
        %v740 = vld [vmem:[%s675 + $0x111] sm:$0xff]
        %v741 = vperm.slane %v380, 1
        %v742 = vmul.f32 %v725, %v741
        %v743 = vmul.f32 %v726, %v741
        %v744 = vmul.f32 %v727, %v741
        %v745 = vmul.f32 %v728, %v741
        %v746 = vmul.f32 %v729, %v741
        %v747 = vmul.f32 %v730, %v741
        %v748 = vmul.f32 %v731, %v741
        %v749 = vmul.f32 %v732, %v741
        %v750 = vmul.f32 %v733, %v741
        %v751 = vmul.f32 %v734, %v741
        %v752 = vmul.f32 %v735, %v741
        %v753 = vmul.f32 %v736, %v741
        %v754 = vmul.f32 %v737, %v741
        %v755 = vmul.f32 %v738, %v741
        %v756 = vmul.f32 %v739, %v741
        %v757 = vmul.f32 %v740, %v741
        %v758 = vadd.f32 %v709, %v742
        %v759 = vadd.f32 %v710, %v743
        %v760 = vadd.f32 %v711, %v744
        %v761 = vadd.f32 %v712, %v745
        %v762 = vadd.f32 %v713, %v746
        %v763 = vadd.f32 %v714, %v747
        %v764 = vadd.f32 %v715, %v748
        %v765 = vadd.f32 %v716, %v749
        %v766 = vadd.f32 %v717, %v750
        %v767 = vadd.f32 %v718, %v751
        %v768 = vadd.f32 %v719, %v752
        %v769 = vadd.f32 %v720, %v753
        %v770 = vadd.f32 %v721, %v754
        %v771 = vadd.f32 %v722, %v755
        %v772 = vadd.f32 %v723, %v756
        %v773 = vadd.f32 %v724, %v757
        %v774 = vld [vmem:[%s675 + $0x2] sm:$0xff]
        %v775 = vld [vmem:[%s675 + $0x12] sm:$0xff]
        %v776 = vld [vmem:[%s675 + $0x22] sm:$0xff]
        %v777 = vld [vmem:[%s675 + $0x32] sm:$0xff]
        %v778 = vld [vmem:[%s675 + $0x42] sm:$0xff]
        %v779 = vld [vmem:[%s675 + $0x52] sm:$0xff]
        %v780 = vld [vmem:[%s675 + $0x62] sm:$0xff]
        %v781 = vld [vmem:[%s675 + $0x72] sm:$0xff]
        %v782 = vld [vmem:[%s675 + $0xa2] sm:$0xff]
        %v783 = vld [vmem:[%s675 + $0xb2] sm:$0xff]
        %v784 = vld [vmem:[%s675 + $0xc2] sm:$0xff]
        %v785 = vld [vmem:[%s675 + $0xd2] sm:$0xff]
        %v786 = vld [vmem:[%s675 + $0xe2] sm:$0xff]
        %v787 = vld [vmem:[%s675 + $0xf2] sm:$0xff]
        %v788 = vld [vmem:[%s675 + $0x102] sm:$0xff]
        %v789 = vld [vmem:[%s675 + $0x112] sm:$0xff]
        %v790 = vperm.slane %v380, 2
        %v791 = vmul.f32 %v774, %v790
        %v792 = vmul.f32 %v775, %v790
        %v793 = vmul.f32 %v776, %v790
        %v794 = vmul.f32 %v777, %v790
        %v795 = vmul.f32 %v778, %v790
        %v796 = vmul.f32 %v779, %v790
        %v797 = vmul.f32 %v780, %v790
        %v798 = vmul.f32 %v781, %v790
        %v799 = vmul.f32 %v782, %v790
        %v800 = vmul.f32 %v783, %v790
        %v801 = vmul.f32 %v784, %v790
        %v802 = vmul.f32 %v785, %v790
        %v803 = vmul.f32 %v786, %v790
        %v804 = vmul.f32 %v787, %v790
        %v805 = vmul.f32 %v788, %v790
        %v806 = vmul.f32 %v789, %v790
        %v807 = vadd.f32 %v758, %v791
        %v808 = vadd.f32 %v759, %v792
        %v809 = vadd.f32 %v760, %v793
        %v810 = vadd.f32 %v761, %v794
        %v811 = vadd.f32 %v762, %v795
        %v812 = vadd.f32 %v763, %v796
        %v813 = vadd.f32 %v764, %v797
        %v814 = vadd.f32 %v765, %v798
        %v815 = vadd.f32 %v766, %v799
        %v816 = vadd.f32 %v767, %v800
        %v817 = vadd.f32 %v768, %v801
        %v818 = vadd.f32 %v769, %v802
        %v819 = vadd.f32 %v770, %v803
        %v820 = vadd.f32 %v771, %v804
        %v821 = vadd.f32 %v772, %v805
        %v822 = vadd.f32 %v773, %v806
        %v823 = vadd.f32 %v807, %v808
        %v824 = vadd.f32 %v823, %v809
        %v825 = vadd.f32 %v824, %v810
        %v826 = vadd.f32 %v825, %v811
        %v827 = vadd.f32 %v826, %v812
        %v828 = vadd.f32 %v827, %v813
        %v829 = vadd.f32 %v828, %v814
        %v830 = vadd.f32 %v829, %v815
        %v831 = vadd.f32 %v830, %v816
        %v832 = vadd.f32 %v831, %v817
        %v833 = vadd.f32 %v832, %v818
        %v834 = vadd.f32 %v833, %v819
        %v835 = vadd.f32 %v834, %v820
        %v836 = vadd.f32 %v835, %v821
        %v837 = vadd.f32 %v836, %v822
        %v838 = vrot.slane %v837, 4
        %v839 = vadd.f32 %v837, %v838
        %v840 = vrot.slane %v839, 2
        %v841 = vadd.f32 %v839, %v840
        %v842 = vrot.slane %v841, 1
        %v843 = vadd.f32 %v841, %v842
        %v844 = vmul.f32 %v807, %v807
        %v845 = vmul.f32 %v808, %v808
        %v846 = vmul.f32 %v809, %v809
        %v847 = vmul.f32 %v810, %v810
        %v848 = vmul.f32 %v811, %v811
        %v849 = vmul.f32 %v812, %v812
        %v850 = vmul.f32 %v813, %v813
        %v851 = vmul.f32 %v814, %v814
        %v852 = vmul.f32 %v815, %v815
        %v853 = vmul.f32 %v816, %v816
        %v854 = vmul.f32 %v817, %v817
        %v855 = vmul.f32 %v818, %v818
        %v856 = vmul.f32 %v819, %v819
        %v857 = vmul.f32 %v820, %v820
        %v858 = vmul.f32 %v821, %v821
        %v859 = vmul.f32 %v822, %v822
        %v860 = vadd.f32 %v844, %v845
        %v861 = vadd.f32 %v860, %v846
        %v862 = vadd.f32 %v861, %v847
        %v863 = vadd.f32 %v862, %v848
        %v864 = vadd.f32 %v863, %v849
        %v865 = vadd.f32 %v864, %v850
        %v866 = vadd.f32 %v865, %v851
        %v867 = vadd.f32 %v866, %v852
        %v868 = vadd.f32 %v867, %v853
        %v869 = vadd.f32 %v868, %v854
        %v870 = vadd.f32 %v869, %v855
        %v871 = vadd.f32 %v870, %v856
        %v872 = vadd.f32 %v871, %v857
        %v873 = vadd.f32 %v872, %v858
        %v874 = vadd.f32 %v873, %v859
        %v875 = vrot.slane %v874, 4
        %v876 = vadd.f32 %v874, %v875
        %v877 = vrot.slane %v876, 2
        %v878 = vadd.f32 %v876, %v877
        %v879 = vrot.slane %v878, 1
        %v880 = vadd.f32 %v878, %v879
        %v881 = vmul.f32 %v843, 0.0078125
        %v882 = vmul.f32 %v880, 0.0078125
        %v883 = vmul.f32 %v881, %v881
        %v884 = vsub.f32 %v882, %v883
        %v885 = vadd.f32 %v884, 0.001
        %v886 = vrsqrt.pop %v885
        %v887 = vmul.f32 %v886, %v885
        %v888 = vmul.f32 %v887, %v886
        %v889 = vmul.f32 0.5, %v888
        %v890 = vsub.f32 1.5, %v889
        %v891 = vmul.f32 %v886, %v890
        %vm892 = vweird.f32 %v885
        %vm893 = vweird.f32 %v886
        %vm894 = vmor %vm892, %vm893
        %v895 = vsel %vm894, %v886, %v891
        %v896 = vld [vmem:[%s263] sm:$0x1]
        %v897 = vmul.f32 %v895, %v896
        %v898 = vld [vmem:[%s303] sm:$0x1]
        %v899 = vmul.f32 %v881, %v897
        %v900 = vsub.f32 %v898, %v899
        %v901 = vperm.slane %v897, 0
        %v902 = vmul.f32 %v807, %v901
        %v903 = vmul.f32 %v808, %v901
        %v904 = vmul.f32 %v809, %v901
        %v905 = vmul.f32 %v810, %v901
        %v906 = vmul.f32 %v811, %v901
        %v907 = vmul.f32 %v812, %v901
        %v908 = vmul.f32 %v813, %v901
        %v909 = vmul.f32 %v814, %v901
        %v910 = vmul.f32 %v815, %v901
        %v911 = vmul.f32 %v816, %v901
        %v912 = vmul.f32 %v817, %v901
        %v913 = vmul.f32 %v818, %v901
        %v914 = vmul.f32 %v819, %v901
        %v915 = vmul.f32 %v820, %v901
        %v916 = vmul.f32 %v821, %v901
        %v917 = vmul.f32 %v822, %v901
        %v919 = vperm.slane %v900, 0
        %v921 = vadd.f32 %v902, %v919
        %v922 = vadd.f32 %v903, %v919
        %v923 = vadd.f32 %v904, %v919
        %v924 = vadd.f32 %v905, %v919
        %v925 = vadd.f32 %v906, %v919
        %v926 = vadd.f32 %v907, %v919
        %v927 = vadd.f32 %v908, %v919
        %v928 = vadd.f32 %v909, %v919
        %v929 = vadd.f32 %v910, %v919
        %v930 = vadd.f32 %v911, %v919
        %v931 = vadd.f32 %v912, %v919
        %v932 = vadd.f32 %v913, %v919
        %v933 = vadd.f32 %v914, %v919
        %v934 = vadd.f32 %v915, %v919
        %v935 = vadd.f32 %v916, %v919
        %v936 = vadd.f32 %v917, %v919
        %937 = vst [vmem:[%s300] sm:$0xff] %v921
        %938 = vst [vmem:[%s300 + $0x8] sm:$0xff] %v922
        %939 = vst [vmem:[%s300 + $0x10] sm:$0xff] %v923
        %940 = vst [vmem:[%s300 + $0x18] sm:$0xff] %v924
        %941 = vst [vmem:[%s300 + $0x20] sm:$0xff] %v925
        %942 = vst [vmem:[%s300 + $0x28] sm:$0xff] %v926
        %943 = vst [vmem:[%s300 + $0x30] sm:$0xff] %v927
        %944 = vst [vmem:[%s300 + $0x38] sm:$0xff] %v928
        %945 = vst [vmem:[%s300 + $0x40] sm:$0xff] %v929
        %946 = vst [vmem:[%s300 + $0x48] sm:$0xff] %v930
        %947 = vst [vmem:[%s300 + $0x50] sm:$0xff] %v931
        %948 = vst [vmem:[%s300 + $0x58] sm:$0xff] %v932
        %949 = vst [vmem:[%s300 + $0x60] sm:$0xff] %v933
        %950 = vst [vmem:[%s300 + $0x68] sm:$0xff] %v934
        %951 = vst [vmem:[%s300 + $0x70] sm:$0xff] %v935
        %952 = vst [vmem:[%s300 + $0x78] sm:$0xff] %v936
        %s953 = sand.u32 %s136, 1
        %s954 = scalar_lea.sflag [#allocation5], %s953
        %s955 = sand.u32 %s136, 1
        %s956 = smul.addr %s955, 128
        %s957 = scalar_lea.vmem [#allocation9], %s956
        // Predicated region
        $region49: #{tpu_custom_call.1} parent=35 // pred_check
          %p958 = pneg %p146
        $region50: #{tpu_custom_call.1} parent=35 // pred_check_branch
          %960 = sbr.rel (%p958) target = $region52
        $region51: #{tpu_custom_call.1} parent=35 // pred_region
          %962 = vsyncadd %s954, 0
          %s963 = smul.addr %s24, 8
          %s964 = scalar_lea.hbm %s4, %s963
          %s965 = sshll.u32 %s957, 4
          %s966 = int_to_ptr.vmem [resolvable:$true] %s965
          %s967 = sshll.u32 %s964, 4
          %s968 = int_to_ptr.hbm [resolvable:$true] %s967
          %973 = dma.vmem_to_hbm [thread:$0]  %s966, 2048, %s968, %s954, 128, 256, 8
        $region52: #{tpu_custom_call.1} parent=35 // pred_fallthru
          _
      $region36: #{tpu_custom_call.1} parent=5 // pred_fallthru
        _
      %p974 = scmp.le.s32.totalorder 2, %s19
      // Predicated region
      $region53: #{tpu_custom_call.1} parent=5 // pred_check
        %p975 = pneg %p974
      $region54: #{tpu_custom_call.1} parent=5 // pred_check_branch
        %977 = sbr.rel (%p975) target = $region56
      $region55: #{tpu_custom_call.1} parent=5 // pred_region
        %s978 = ssub.s32 %s19, 2
        // Predicated region
        $region57: #{tpu_custom_call.1} parent=55 // pred_check
          %p979 = pneg %p152
        $region58: #{tpu_custom_call.1} parent=55 // pred_check_branch
          %981 = sbr.rel (%p979) target = $region60
        $region59: #{tpu_custom_call.1} parent=55 // pred_region
          %s982 = sand.u32 %s137, 1
          %s983 = scalar_lea.sflag [#allocation5], %s982
          %s984 = sand.u32 %s137, 1
          %s985 = smul.addr %s984, 128
          %s986 = scalar_lea.vmem [#allocation9], %s985
          %988 = dma.done %s983, 2048
        $region60: #{tpu_custom_call.1} parent=55 // pred_fallthru
          _
      $region56: #{tpu_custom_call.1} parent=5 // pred_fallthru
        _
    $region6: #{tpu_custom_call.1} parent=1 // loop_footer
      %s23 = sadd.s32 1, %s19
    $region7: #{tpu_custom_call.1} parent=1 // loop_footer_branch
      %18 = sbr.rel target = $region3
    $region8: #{tpu_custom_call.1} parent=1 // loop_exit
      _
    %989 = vsyncpa [#allocation4], 1
    %s990 = scalar_lea.sflag [#allocation4], 1
    %991 = vsyncpa %s990, 1
    %992 = vsyncpa [#allocation7], 1
    %s993 = scalar_lea.sflag [#allocation7], 1
    %994 = vsyncpa %s993, 1
    %995 = vsyncpa [#allocation5], 1
    %s996 = scalar_lea.sflag [#allocation5], 1
    %997 = vsyncpa %s996, 1

</llo_original>
